<compile_context>
chip_gen: v6e
topology: v6e:2x2x1
jax: 0.10.0
libtpu: 0.0.40
codegen_flags: <defaults>
</compile_context>

<pallas_src>
import numpy as np
import jax
import jax.numpy as jnp
from jax.experimental import pallas as pl
from jax.experimental.pallas import tpu as pltpu


def _llt_kernel(i_ids, j_ids, k_ids, v_ids, l_ref, lt_ref, lo_ref, up_ref):
    """One grid step of the triangular L @ L^T.

    Grid = (core_split, step).  The flattened step index g selects an
    (i, j, k, valid) tuple from the prefetched SMEM tables.  Within each core
    split, all k steps of a given output block (i, j) are contiguous and start
    at k == 0, so the f32 output block stays resident in VMEM across them.
    Pad steps (valid == 0) repeat the previous block indices, so they trigger
    neither new DMAs nor compute.
    """
    c = pl.program_id(0)
    s = pl.program_id(1)
    g = c * pl.num_programs(1) + s
    valid = v_ids[g] == 1
    k = k_ids[g]

    @pl.when(jnp.logical_and(valid, k == 0))
    def _():
        lo_ref[...] = jnp.zeros_like(lo_ref)

    @pl.when(valid)
    def _():
        # (tm, tk) @ (tk, tn) on the MXU, f32 accumulation into the resident
        # output block (operands already bf16 from the wrapper).
        lo_ref[...] += jnp.dot(
            l_ref[...], lt_ref[...], preferred_element_type=jnp.float32
        )

    # Last k step of this output block (kmax(j) == j because tk == tm): emit
    # the mirrored upper-triangle block; the XLU transpose hides under the MXU
    # and saves a full n^2 XLA transpose in the epilogue.
    @pl.when(jnp.logical_and(valid, k == j_ids[g]))
    def _():
        up_ref[...] = lo_ref[...].T


def _pick_tile(n):
    """Square tile (tm == tn == tk), always a multiple of 128.

    512-wide f32 output tiles with bf16 operands give ~256 FLOP/byte of input
    traffic (compute-bound on v5e, close on v7x, ~2.6x better than 256 tiles on
    v6e) at only ~6 MiB of double-buffered VMEM.  n <= 512 uses one padded
    block.
    """
    if n <= 512:
        return ((n + 127) // 128) * 128
    return 512


def cholesky_forward(L, *, tile=None, operand_dtype=jnp.bfloat16, core_splits=2):
    """Pallas implementation of CholeskyLayer.forward(): returns L @ L^T.

    Note: operands are fed to the MXU as bf16 by default (same product
    precision as jnp.dot's default on TPU); pass operand_dtype=jnp.float32 to
    keep f32 operand storage.  Accumulation is always f32.
    """
    n, n2 = L.shape
    assert n == n2, "L must be square"
    dtype = L.dtype

    tile = int(tile) if tile is not None else _pick_tile(n)
    assert tile % 128 == 0, "tile must be a multiple of 128"
    tm = tn = tk = tile

    # Zero-pad so every block is fully defined (padded rows/cols contribute 0).
    n_pad = ((n + tile - 1) // tile) * tile
    L_p = jnp.pad(L, ((0, n_pad - n), (0, n_pad - n))) if n_pad != n else L
    L_op = L_p.astype(operand_dtype)
    LT_op = L_op.T  # one cheap XLA transpose feeding the NN-form matmul

    nbm = n_pad // tile

    # Triangular output-block list (i >= j); since tk == tm, kmax(j) == j.
    groups = [(i, j) for i in range(nbm) for j in range(i + 1)]
    core_splits = max(1, min(int(core_splits), len(groups)))

    # Balance the (i, j) groups across core splits by their k-step counts.
    bins = [[] for _ in range(core_splits)]
    bin_steps = [0] * core_splits
    for (i, j) in sorted(groups, key=lambda ij: -(ij[1] + 1)):
        b = int(np.argmin(bin_steps))
        bins[b].append((i, j))
        bin_steps[b] += j + 1
    spc = max(bin_steps)  # steps per core split (padded to equal length)

    i_t = np.zeros((core_splits, spc), np.int32)
    j_t = np.zeros_like(i_t)
    k_t = np.zeros_like(i_t)
    v_t = np.zeros_like(i_t)  # 1 = real step, 0 = pad step
    for b, grp in enumerate(bins):
        grp.sort()
        pos = 0
        for (i, j) in grp:
            for k in range(j + 1):
                i_t[b, pos], j_t[b, pos], k_t[b, pos], v_t[b, pos] = i, j, k, 1
                pos += 1
        if grp and pos < spc:
            li, lj = grp[-1]  # repeat last block: no new DMA, compute skipped
            i_t[b, pos:], j_t[b, pos:], k_t[b, pos:] = li, lj, lj

    i_ids = jnp.asarray(i_t.reshape(-1))
    j_ids = jnp.asarray(j_t.reshape(-1))
    k_ids = jnp.asarray(k_t.reshape(-1))
    v_ids = jnp.asarray(v_t.reshape(-1))

    valid_steps = sum(j + 1 for (_, j) in groups)
    op_itemsize = jnp.dtype(operand_dtype).itemsize
    cost = pl.CostEstimate(
        flops=2 * valid_steps * tm * tn * tk,
        transcendentals=0,
        bytes_accessed=2 * valid_steps * tm * tk * op_itemsize
        + 2 * len(groups) * tm * tn * 4,
    )

    # Double-buffered inputs + two double-buffered f32 output blocks + headroom.
    vmem_bytes = (
        2 * tm * tk * op_itemsize
        + 2 * tk * tn * op_itemsize
        + 2 * 2 * tm * tn * 4
    )
    vmem_limit = max(32 * 1024 * 1024,
                     min(vmem_bytes + 8 * 1024 * 1024, 64 * 1024 * 1024))

    def l_map(c, s, i_r, j_r, k_r, v_r):       # rows of L: block (i, k)
        g = c * spc + s
        return (i_r[g], k_r[g])

    def lt_map(c, s, i_r, j_r, k_r, v_r):      # columns of L^T: block (k, j)
        g = c * spc + s
        return (k_r[g], j_r[g])

    def lo_map(c, s, i_r, j_r, k_r, v_r):      # lower-triangle output block
        g = c * spc + s
        return (i_r[g], j_r[g])

    def up_map(c, s, i_r, j_r, k_r, v_r):      # mirrored upper-triangle block
        g = c * spc + s
        return (j_r[g], i_r[g])

    lo_pad, up_pad = pl.pallas_call(
        _llt_kernel,
        out_shape=(
            jax.ShapeDtypeStruct((n_pad, n_pad), jnp.float32),
            jax.ShapeDtypeStruct((n_pad, n_pad), jnp.float32),
        ),
        grid_spec=pltpu.PrefetchScalarGridSpec(
            num_scalar_prefetch=4,
            grid=(core_splits, spc),
            in_specs=[
                pl.BlockSpec((tm, tk), l_map),
                pl.BlockSpec((tk, tn), lt_map),
            ],
            out_specs=[
                pl.BlockSpec((tm, tn), lo_map),
                pl.BlockSpec((tm, tn), up_map),
            ],
        ),
        compiler_params=pltpu.CompilerParams(
            dimension_semantics=("parallel", "arbitrary"),
            vmem_limit_bytes=int(vmem_limit),
        ),
        cost_estimate=cost,
    )(i_ids, j_ids, k_ids, v_ids, L_op, LT_op)

    # Merge: lower triangle (incl. diagonal) from lo, mirrored upper from up.
    # Blocks never written by the kernel lie strictly on the "wrong" side of
    # the block diagonal (tn == tm), so the select never reads garbage.
    lo = lo_pad[:n, :n]
    up = up_pad[:n, :n]
    row_ids = jax.lax.broadcasted_iota(jnp.int32, (n, n), 0)
    col_ids = jax.lax.broadcasted_iota(jnp.int32, (n, n), 1)
    out = jnp.where(row_ids >= col_ids, lo, up)
    return out.astype(dtype)


def make_cholesky_param(key, n, dtype=jnp.float32):
    """Deterministic re-creation of CholeskyLayer.__init__:
    L = tril(randn(n, n)); L[i, i] = exp(L[i, i])."""
    raw = jax.random.normal(key, (n, n), dtype=dtype)
    L = jnp.tril(raw)
    diag = jnp.exp(jnp.diag(raw))
    L = L - jnp.diag(jnp.diag(L)) + jnp.diag(diag)
    return L


def _rel_err(a, b):
    return float(jnp.max(jnp.abs(a - b)) / (jnp.max(jnp.abs(b)) + 1e-6))


if __name__ == "__main__":
    key = jax.random.PRNGKey(0)
    kx, kl1, kl2, kl3 = jax.random.split(key, 4)

    # --- module-sized demo: symmetric x only defines the parameter size n ---
    n = 32
    x0 = jax.random.normal(kx, (n, n), dtype=jnp.float32)
    x = x0 @ x0.T  # symmetric input (torch module only validates/sizes on it)
    L = make_cholesky_param(kl1, n)
    out = jax.block_until_ready(cholesky_forward(L))
    ref = jnp.dot(L, L.T, precision=jax.lax.Precision.HIGHEST)
    assert out.shape == (n, n) and out.dtype == L.dtype
    assert _rel_err(out, ref) < 2e-2, f"small-case mismatch: {_rel_err(out, ref)}"

    # --- default single-block path at a medium size ---
    n2 = 384
    L2 = make_cholesky_param(kl2, n2)
    out2 = jax.block_until_ready(cholesky_forward(L2))
    ref2 = jnp.dot(L2, L2.T, precision=jax.lax.Precision.HIGHEST)
    assert _rel_err(out2, ref2) < 2e-2, f"medium mismatch: {_rel_err(out2, ref2)}"

    # --- force the multi-block triangular grid, 2-way core split, padding and
    #     pad-step paths at a small size (tile=128 -> 5x5 blocks of 640) ---
    n3 = 600
    L3 = make_cholesky_param(kl3, n3)
    out3 = jax.block_until_ready(cholesky_forward(L3, tile=128))
    ref3 = jnp.dot(L3, L3.T, precision=jax.lax.Precision.HIGHEST)
    assert _rel_err(out3, ref3) < 2e-2, f"tiled mismatch: {_rel_err(out3, ref3)}"

    print("KERNEL_OK")
</pallas_src>

<mosaic_0001>
module attributes {stable_mosaic.version = 11 : i64} {
  func.func @_llt_kernel(%arg0: i32, %arg1: i32, %arg2: memref<1xi32, #tpu.memory_space<smem>>, %arg3: memref<1xi32, #tpu.memory_space<smem>>, %arg4: memref<1xi32, #tpu.memory_space<smem>>, %arg5: memref<1xi32, #tpu.memory_space<smem>>, %arg6: memref<128x128xbf16, #tpu.memory_space<vmem>>, %arg7: memref<128x128xbf16, #tpu.memory_space<vmem>>, %arg8: memref<128x128xf32, #tpu.memory_space<vmem>>, %arg9: memref<128x128xf32, #tpu.memory_space<vmem>>) attributes {dimension_semantics = [#tpu.dimension_semantics<parallel>, #tpu.dimension_semantics<arbitrary>], iteration_bounds = array<i64: 1, 1>, scalar_prefetch = 4 : i64, scratch_operands = 0 : i64, tpu.core_type = #tpu.core_type<tc>, window_params = [{transform_indices = @transform_0, window_bounds = array<i64: 128, 128>}, {transform_indices = @transform_1, window_bounds = array<i64: 128, 128>}, {transform_indices = @transform_2, window_bounds = array<i64: 128, 128>}, {transform_indices = @transform_3, window_bounds = array<i64: 128, 128>}]} {
    %c1_i32 = arith.constant 1 : i32
    %0 = arith.muli %arg0, %c1_i32 : i32
    %1 = arith.addi %0, %arg1 : i32
    %2 = arith.index_cast %1 : i32 to index
    %3 = memref.load %arg5[%2] : memref<1xi32, #tpu.memory_space<smem>>
    %c1_i32_0 = arith.constant 1 : i32
    %4 = arith.cmpi eq, %3, %c1_i32_0 : i32
    %5 = arith.index_cast %1 : i32 to index
    %6 = memref.load %arg4[%5] : memref<1xi32, #tpu.memory_space<smem>>
    %c0_i32 = arith.constant 0 : i32
    %7 = arith.cmpi eq, %6, %c0_i32 : i32
    %8 = arith.andi %4, %7 : i1
    %9 = arith.extui %8 : i1 to i32
    %c0_i32_1 = arith.constant 0 : i32
    %10 = arith.cmpi ne, %9, %c0_i32_1 : i32
    scf.if %10 {
      %cst = arith.constant 0.000000e+00 : f32
      %19 = vector.broadcast %cst : f32 to vector<128x128xf32>
      %c0 = arith.constant 0 : index
      %c0_4 = arith.constant 0 : index
      %20 = vector.load %arg8[%c0, %c0_4] : memref<128x128xf32, #tpu.memory_space<vmem>>, vector<128x128xf32>
      tpu.vector_store %arg8[%c0, %c0_4], %19 {strides = array<i32>} : memref<128x128xf32, #tpu.memory_space<vmem>>, vector<128x128xf32>,
    } else {
    }
    %11 = arith.extui %4 : i1 to i32
    %c0_i32_2 = arith.constant 0 : i32
    %12 = arith.cmpi ne, %11, %c0_i32_2 : i32
    scf.if %12 {
      %c0 = arith.constant 0 : index
      %c0_4 = arith.constant 0 : index
      %19 = vector.load %arg8[%c0, %c0_4] : memref<128x128xf32, #tpu.memory_space<vmem>>, vector<128x128xf32>
      %c0_5 = arith.constant 0 : index
      %c0_6 = arith.constant 0 : index
      %20 = vector.load %arg6[%c0_5, %c0_6] : memref<128x128xbf16, #tpu.memory_space<vmem>>, vector<128x128xbf16>
      %c0_7 = arith.constant 0 : index
      %c0_8 = arith.constant 0 : index
      %21 = vector.load %arg7[%c0_7, %c0_8] : memref<128x128xbf16, #tpu.memory_space<vmem>>, vector<128x128xbf16>
      %cst = arith.constant dense<0.000000e+00> : vector<128x128xf32>
      %22 = tpu.matmul %20, %21, %cst {dimension_numbers = #tpu.dot_dimension_numbers<[1], [0], [0], [1], [0, 0, 1, 1], [], []>} : vector<128x128xbf16>, vector<128x128xbf16>, vector<128x128xf32> -> vector<128x128xf32>
      %23 = arith.addf %19, %22 : vector<128x128xf32>
      %c0_9 = arith.constant 0 : index
      %c0_10 = arith.constant 0 : index
      %24 = vector.load %arg8[%c0_9, %c0_10] : memref<128x128xf32, #tpu.memory_space<vmem>>, vector<128x128xf32>
      tpu.vector_store %arg8[%c0_9, %c0_10], %23 {strides = array<i32>} : memref<128x128xf32, #tpu.memory_space<vmem>>, vector<128x128xf32>,
    } else {
    }
    %13 = arith.index_cast %1 : i32 to index
    %14 = memref.load %arg3[%13] : memref<1xi32, #tpu.memory_space<smem>>
    %15 = arith.cmpi eq, %6, %14 : i32
    %16 = arith.andi %4, %15 : i1
    %17 = arith.extui %16 : i1 to i32
    %c0_i32_3 = arith.constant 0 : i32
    %18 = arith.cmpi ne, %17, %c0_i32_3 : i32
    scf.if %18 {
      %c0 = arith.constant 0 : index
      %c0_4 = arith.constant 0 : index
      %19 = vector.load %arg8[%c0, %c0_4] : memref<128x128xf32, #tpu.memory_space<vmem>>, vector<128x128xf32>
      %20 = tpu.transpose %19, [1, 0] : vector<128x128xf32> -> vector<128x128xf32>
      %c0_5 = arith.constant 0 : index
      %c0_6 = arith.constant 0 : index
      %21 = vector.load %arg9[%c0_5, %c0_6] : memref<128x128xf32, #tpu.memory_space<vmem>>, vector<128x128xf32>
      tpu.vector_store %arg9[%c0_5, %c0_6], %20 {strides = array<i32>} : memref<128x128xf32, #tpu.memory_space<vmem>>, vector<128x128xf32>,
    } else {
    }
    return
  }
  func.func @transform_0(%arg0: i32, %arg1: i32, %arg2: memref<1xi32, #tpu.memory_space<smem>>, %arg3: memref<1xi32, #tpu.memory_space<smem>>, %arg4: memref<1xi32, #tpu.memory_space<smem>>, %arg5: memref<1xi32, #tpu.memory_space<smem>>) -> (i32, i32) {
    %c1_i32 = arith.constant 1 : i32
    %0 = arith.muli %arg0, %c1_i32 : i32
    %1 = arith.addi %0, %arg1 : i32
    %2 = arith.index_cast %1 : i32 to index
    %3 = memref.load %arg2[%2] : memref<1xi32, #tpu.memory_space<smem>>
    %4 = arith.index_cast %1 : i32 to index
    %5 = memref.load %arg4[%4] : memref<1xi32, #tpu.memory_space<smem>>
    %c0_i32 = arith.constant 0 : i32
    return %3, %5 : i32, i32
  }
  func.func @transform_1(%arg0: i32, %arg1: i32, %arg2: memref<1xi32, #tpu.memory_space<smem>>, %arg3: memref<1xi32, #tpu.memory_space<smem>>, %arg4: memref<1xi32, #tpu.memory_space<smem>>, %arg5: memref<1xi32, #tpu.memory_space<smem>>) -> (i32, i32) {
    %c1_i32 = arith.constant 1 : i32
    %0 = arith.muli %arg0, %c1_i32 : i32
    %1 = arith.addi %0, %arg1 : i32
    %2 = arith.index_cast %1 : i32 to index
    %3 = memref.load %arg4[%2] : memref<1xi32, #tpu.memory_space<smem>>
    %4 = arith.index_cast %1 : i32 to index
    %5 = memref.load %arg3[%4] : memref<1xi32, #tpu.memory_space<smem>>
    %c0_i32 = arith.constant 0 : i32
    return %3, %5 : i32, i32
  }
  func.func @transform_2(%arg0: i32, %arg1: i32, %arg2: memref<1xi32, #tpu.memory_space<smem>>, %arg3: memref<1xi32, #tpu.memory_space<smem>>, %arg4: memref<1xi32, #tpu.memory_space<smem>>, %arg5: memref<1xi32, #tpu.memory_space<smem>>) -> (i32, i32) {
    %c1_i32 = arith.constant 1 : i32
    %0 = arith.muli %arg0, %c1_i32 : i32
    %1 = arith.addi %0, %arg1 : i32
    %2 = arith.index_cast %1 : i32 to index
    %3 = memref.load %arg2[%2] : memref<1xi32, #tpu.memory_space<smem>>
    %4 = arith.index_cast %1 : i32 to index
    %5 = memref.load %arg3[%4] : memref<1xi32, #tpu.memory_space<smem>>
    %c0_i32 = arith.constant 0 : i32
    return %3, %5 : i32, i32
  }
  func.func @transform_3(%arg0: i32, %arg1: i32, %arg2: memref<1xi32, #tpu.memory_space<smem>>, %arg3: memref<1xi32, #tpu.memory_space<smem>>, %arg4: memref<1xi32, #tpu.memory_space<smem>>, %arg5: memref<1xi32, #tpu.memory_space<smem>>) -> (i32, i32) {
    %c1_i32 = arith.constant 1 : i32
    %0 = arith.muli %arg0, %c1_i32 : i32
    %1 = arith.addi %0, %arg1 : i32
    %2 = arith.index_cast %1 : i32 to index
    %3 = memref.load %arg3[%2] : memref<1xi32, #tpu.memory_space<smem>>
    %4 = arith.index_cast %1 : i32 to index
    %5 = memref.load %arg2[%4] : memref<1xi32, #tpu.memory_space<smem>>
    %c0_i32 = arith.constant 0 : i32
    return %3, %5 : i32, i32
  }
}

</mosaic_0001>

<llo_original>
// kernel: tpu_custom_call.1
$region0: #{tpu_custom_call.1}
  #allocation0 [shape = 'u32[]', space=smem, size = 0x4, offset = 0x4, fixed_abs, tag = 'smem constant byte address 0x4 - core index']
  #allocation1 [shape = 'u32[144,128]{1,0:T(1,128)}', space=vmem, size = 0x12000, scoped, tag = 'internal scratch']
  #allocation2 [shape = 's32[1]{0}', space=sflag, size = 0x4, scoped, tag = 'scoped memory for tpu_custom_call.1']
  #allocation3 [shape = 's32[1]{0:T(128)S(6)}', space=smem, size = 0x200, scoped, tag = 'prefetched SMEM operand 0']
  #allocation4 [shape = 's32[1]{0:T(128)S(6)}', space=smem, size = 0x200, scoped, tag = 'prefetched SMEM operand 1']
  #allocation5 [shape = 's32[1]{0:T(128)S(6)}', space=smem, size = 0x200, scoped, tag = 'prefetched SMEM operand 2']
  #allocation6 [shape = 's32[1]{0:T(128)S(6)}', space=smem, size = 0x200, scoped, tag = 'prefetched SMEM operand 3']
  %s0 = inlined_call_operand.<no memory space> [shape: s32[1], index: 0, kind: input, shape index: {}]
  %s1 = inlined_call_operand.<no memory space> [shape: s32[1], index: 1, kind: input, shape index: {}]
  %s2 = inlined_call_operand.<no memory space> [shape: s32[1], index: 2, kind: input, shape index: {}]
  %s3 = inlined_call_operand.<no memory space> [shape: s32[1], index: 3, kind: input, shape index: {}]
  %s4 = inlined_call_operand.hbm [shape: bf16[128,128], index: 4, kind: input, shape index: {}]
  %s5 = inlined_call_operand.hbm [shape: bf16[128,128], index: 5, kind: input, shape index: {}]
  %s6 = inlined_call_operand.hbm [shape: f32[128,128], index: 6, kind: output, shape index: {0}]
  %s7 = inlined_call_operand.hbm [shape: f32[128,128], index: 7, kind: output, shape index: {1}]
  %8 = xla_tuple %s6, %s7
  %s9 = sld [smem:[#allocation0]]
  $region46: #{tpu_custom_call.1} parent=0
    _
  %s11 = ssub.s32 1, %s9
  %s12 = scalar_select 0, %s11, %s9
  %13 = sst [smem:[#allocation3]] %s0
  %14 = sst [smem:[#allocation4]] %s1
  %15 = sst [smem:[#allocation5]] %s2
  %16 = sst [smem:[#allocation6]] %s3
  $region1: #{tpu_custom_call.1} parent=0
    #allocation7 [shape = 'u8[32768]{0}', space=vmem, size = 0x8000, scoped, tag = 'input window, operand 4, single buffered']
    #allocation8 [shape = 's32[1]{0}', space=sflag, size = 0x4, scoped, tag = 'scoped memory for tpu_custom_call.1']
    #allocation9 [shape = 's32[1]{0}', space=sflag, size = 0x4, scoped, tag = 'scoped memory for tpu_custom_call.1']
    #allocation10 [shape = 'u8[32768]{0}', space=vmem, size = 0x8000, scoped, tag = 'input window, operand 5, single buffered']
    #allocation11 [shape = 's32[1]{0}', space=sflag, size = 0x4, scoped, tag = 'scoped memory for tpu_custom_call.1']
    #allocation12 [shape = 'u8[65536]{0}', space=vmem, size = 0x10000, scoped, tag = 'output window, operand 0, single buffered']
    #allocation13 [shape = 'u8[65536]{0}', space=vmem, size = 0x10000, scoped, tag = 'output window, operand 1, single buffered']
    #allocation14 [shape = 's32[1]{0}', space=sflag, size = 0x4, scoped, tag = 'scoped memory for tpu_custom_call.1']
    %17 = vsyncpa [#allocation8], 0
    %18 = vsyncpa [#allocation11], 0
    %19 = vsyncpa [#allocation9], 0
    %20 = vsyncpa [#allocation14], 0
    // Predicated region
    $region2: #{tpu_custom_call.1} parent=1 // pred_check
      _
    $region3: #{tpu_custom_call.1} parent=1 // pred_check_branch
      %22 = sbr.rel (0) target = $region5
    $region4: #{tpu_custom_call.1} parent=1 // pred_region
      %s23 = sadd.s32 0, 0
      %s24 = sld [smem:[#allocation3 + %s23]]
      %s25 = sld [smem:[#allocation5 + %s23]]
      %s26 = smul.u32 16, %s24
      %s28 = ssub.s32 1024, 1024
      %29 = vsyncadd [#allocation8], %s28
      %s30 = sadd.s32 %s25, %s26
      %s31 = smul.addr %s30, 64
      %s32 = scalar_lea.hbm %s4, %s31
      %s33 = sshll.u32 [#allocation7], 4
      %s34 = int_to_ptr.vmem [resolvable:$true] %s33
      %39 = dma.hbm_to_vmem [thread:$0]  %s32, 1024, %s34, [#allocation8], 64, 64, 4
    $region5: #{tpu_custom_call.1} parent=1 // pred_fallthru
      _
    // Predicated region
    $region6: #{tpu_custom_call.1} parent=1 // pred_check
      _
    $region7: #{tpu_custom_call.1} parent=1 // pred_check_branch
      %41 = sbr.rel (0) target = $region9
    $region8: #{tpu_custom_call.1} parent=1 // pred_region
      %s42 = sadd.s32 0, 0
      %s43 = sld [smem:[#allocation5 + %s42]]
      %s44 = sld [smem:[#allocation4 + %s42]]
      %s45 = smul.u32 16, %s43
      %s47 = ssub.s32 1024, 1024
      %48 = vsyncadd [#allocation11], %s47
      %s49 = sadd.s32 %s44, %s45
      %s50 = smul.addr %s49, 64
      %s51 = scalar_lea.hbm %s5, %s50
      %s52 = sshll.u32 [#allocation10], 4
      %s53 = int_to_ptr.vmem [resolvable:$true] %s52
      %58 = dma.hbm_to_vmem [thread:$0]  %s51, 1024, %s53, [#allocation11], 64, 64, 4
    $region9: #{tpu_custom_call.1} parent=1 // pred_fallthru
      _
    // Predicated region
    $region10: #{tpu_custom_call.1} parent=1 // pred_check
      _
    $region11: #{tpu_custom_call.1} parent=1 // pred_check_branch
      %60 = sbr.rel (0) target = $region13
    $region12: #{tpu_custom_call.1} parent=1 // pred_region
      %61 = dma.done [#allocation8], 1024
    $region13: #{tpu_custom_call.1} parent=1 // pred_fallthru
      _
    // Predicated region
    $region14: #{tpu_custom_call.1} parent=1 // pred_check
      _
    $region15: #{tpu_custom_call.1} parent=1 // pred_check_branch
      %63 = sbr.rel (0) target = $region17
    $region16: #{tpu_custom_call.1} parent=1 // pred_region
      %64 = dma.done [#allocation11], 1024
    $region17: #{tpu_custom_call.1} parent=1 // pred_fallthru
      _
    %s65 = sadd.s32 0, 0
    %s66 = sld [smem:[#allocation3 + %s65]]
    %s67 = sld [smem:[#allocation5 + %s65]]
    %s68 = smul.u32 16, %s66
    %s69 = sadd.s32 0, 0
    %s70 = sld [smem:[#allocation5 + %s69]]
    %s71 = sld [smem:[#allocation4 + %s69]]
    %s72 = smul.u32 16, %s70
    %s73 = sadd.s32 0, 0
    %s74 = sld [smem:[#allocation3 + %s73]]
    %s75 = sld [smem:[#allocation4 + %s73]]
    %s76 = smul.u32 16, %s74
    %s77 = sadd.s32 0, 0
    %s78 = sld [smem:[#allocation4 + %s77]]
    %s79 = sld [smem:[#allocation3 + %s77]]
    %s80 = smul.u32 16, %s78
    %s82 = sadd.s32 0, 0
    %s83 = sld [smem:[#allocation6 + %s82]]
    %p84 = scmp.eq.s32.totalorder %s83, 1
    %s85 = sld [smem:[#allocation5 + %s82]]
    %p86 = scmp.eq.s32.totalorder %s85, 0
    %p87 = pnand %p84, %p86
    %p88 = pneg %p87
    // Predicated region
    $region18: #{tpu_custom_call.1} parent=1 // pred_check
      _
    $region19: #{tpu_custom_call.1} parent=1 // pred_check_branch
      %90 = sbr.rel (%p87) target = $region21
    $region20: #{tpu_custom_call.1} parent=1 // pred_region
      %91 = vst [vmem:[#allocation12] sm:$0xff] 0.0
      %92 = vst [vmem:[#allocation12 + $0x8] sm:$0xff] 0.0
      %93 = vst [vmem:[#allocation12 + $0x10] sm:$0xff] 0.0
      %94 = vst [vmem:[#allocation12 + $0x18] sm:$0xff] 0.0
      %95 = vst [vmem:[#allocation12 + $0x20] sm:$0xff] 0.0
      %96 = vst [vmem:[#allocation12 + $0x28] sm:$0xff] 0.0
      %97 = vst [vmem:[#allocation12 + $0x30] sm:$0xff] 0.0
      %98 = vst [vmem:[#allocation12 + $0x38] sm:$0xff] 0.0
      %99 = vst [vmem:[#allocation12 + $0x40] sm:$0xff] 0.0
      %100 = vst [vmem:[#allocation12 + $0x48] sm:$0xff] 0.0
      %101 = vst [vmem:[#allocation12 + $0x50] sm:$0xff] 0.0
      %102 = vst [vmem:[#allocation12 + $0x58] sm:$0xff] 0.0
      %103 = vst [vmem:[#allocation12 + $0x60] sm:$0xff] 0.0
      %104 = vst [vmem:[#allocation12 + $0x68] sm:$0xff] 0.0
      %105 = vst [vmem:[#allocation12 + $0x70] sm:$0xff] 0.0
      %106 = vst [vmem:[#allocation12 + $0x78] sm:$0xff] 0.0
    $region21: #{tpu_custom_call.1} parent=1 // pred_fallthru
      _
    // Predicated region
    $region22: #{tpu_custom_call.1} parent=1 // pred_check
      %p107 = pneg %p84
    $region23: #{tpu_custom_call.1} parent=1 // pred_check_branch
      %109 = sbr.rel (%p107) target = $region25
    $region24: #{tpu_custom_call.1} parent=1 // pred_region
      %v110 = vld [vmem:[#allocation12] sm:$0xff]
      %v111 = vld [vmem:[#allocation12 + $0x8] sm:$0xff]
      %v112 = vld [vmem:[#allocation12 + $0x10] sm:$0xff]
      %v113 = vld [vmem:[#allocation12 + $0x18] sm:$0xff]
      %v114 = vld [vmem:[#allocation12 + $0x20] sm:$0xff]
      %v115 = vld [vmem:[#allocation12 + $0x28] sm:$0xff]
      %v116 = vld [vmem:[#allocation12 + $0x30] sm:$0xff]
      %v117 = vld [vmem:[#allocation12 + $0x38] sm:$0xff]
      %v118 = vld [vmem:[#allocation12 + $0x40] sm:$0xff]
      %v119 = vld [vmem:[#allocation12 + $0x48] sm:$0xff]
      %v120 = vld [vmem:[#allocation12 + $0x50] sm:$0xff]
      %v121 = vld [vmem:[#allocation12 + $0x58] sm:$0xff]
      %v122 = vld [vmem:[#allocation12 + $0x60] sm:$0xff]
      %v123 = vld [vmem:[#allocation12 + $0x68] sm:$0xff]
      %v124 = vld [vmem:[#allocation12 + $0x70] sm:$0xff]
      %v125 = vld [vmem:[#allocation12 + $0x78] sm:$0xff]
      %v126 = vld [vmem:[#allocation7] sm:$0xf]
      %v127 = vld [vmem:[#allocation7 + $0x4] sm:$0xf]
      %v128 = vld [vmem:[#allocation7 + $0x8] sm:$0xf]
      %v129 = vld [vmem:[#allocation7 + $0xc] sm:$0xf]
      %v130 = vld [vmem:[#allocation7 + $0x10] sm:$0xf]
      %v131 = vld [vmem:[#allocation7 + $0x14] sm:$0xf]
      %v132 = vld [vmem:[#allocation7 + $0x18] sm:$0xf]
      %v133 = vld [vmem:[#allocation7 + $0x1c] sm:$0xf]
      %v134 = vld [vmem:[#allocation7 + $0x20] sm:$0xf]
      %v135 = vld [vmem:[#allocation7 + $0x24] sm:$0xf]
      %v136 = vld [vmem:[#allocation7 + $0x28] sm:$0xf]
      %v137 = vld [vmem:[#allocation7 + $0x2c] sm:$0xf]
      %v138 = vld [vmem:[#allocation7 + $0x30] sm:$0xf]
      %v139 = vld [vmem:[#allocation7 + $0x34] sm:$0xf]
      %v140 = vld [vmem:[#allocation7 + $0x38] sm:$0xf]
      %v141 = vld [vmem:[#allocation7 + $0x3c] sm:$0xf]
      %v142 = vld [vmem:[#allocation10] sm:$0xf]
      %v143 = vld [vmem:[#allocation10 + $0x4] sm:$0xf]
      %v144 = vld [vmem:[#allocation10 + $0x8] sm:$0xf]
      %v145 = vld [vmem:[#allocation10 + $0xc] sm:$0xf]
      %v146 = vld [vmem:[#allocation10 + $0x10] sm:$0xf]
      %v147 = vld [vmem:[#allocation10 + $0x14] sm:$0xf]
      %v148 = vld [vmem:[#allocation10 + $0x18] sm:$0xf]
      %v149 = vld [vmem:[#allocation10 + $0x1c] sm:$0xf]
      %v150 = vld [vmem:[#allocation10 + $0x20] sm:$0xf]
      %v151 = vld [vmem:[#allocation10 + $0x24] sm:$0xf]
      %v152 = vld [vmem:[#allocation10 + $0x28] sm:$0xf]
      %v153 = vld [vmem:[#allocation10 + $0x2c] sm:$0xf]
      %v154 = vld [vmem:[#allocation10 + $0x30] sm:$0xf]
      %v155 = vld [vmem:[#allocation10 + $0x34] sm:$0xf]
      %v156 = vld [vmem:[#allocation10 + $0x38] sm:$0xf]
      %v157 = vld [vmem:[#allocation10 + $0x3c] sm:$0xf]
      %v174 = vunpack.c.l.b16 %v126
      %v175 = vunpack.c.l.b16 %v127
      %v176 = vunpack.c.l.b16 %v128
      %v177 = vunpack.c.l.b16 %v129
      %v178 = vunpack.c.l.b16 %v130
      %v179 = vunpack.c.l.b16 %v131
      %v180 = vunpack.c.l.b16 %v132
      %v181 = vunpack.c.l.b16 %v133
      %v182 = vunpack.c.l.b16 %v134
      %v183 = vunpack.c.l.b16 %v135
      %v184 = vunpack.c.l.b16 %v136
      %v185 = vunpack.c.l.b16 %v137
      %v186 = vunpack.c.l.b16 %v138
      %v187 = vunpack.c.l.b16 %v139
      %v188 = vunpack.c.l.b16 %v140
      %v189 = vunpack.c.l.b16 %v141
      %v190 = vpack.c.b16 %v175, %v174
      %v191 = vpack.c.b16 %v177, %v176
      %v192 = vpack.c.b16 %v179, %v178
      %v193 = vpack.c.b16 %v181, %v180
      %v194 = vpack.c.b16 %v183, %v182
      %v195 = vpack.c.b16 %v185, %v184
      %v196 = vpack.c.b16 %v187, %v186
      %v197 = vpack.c.b16 %v189, %v188
      %v222 = vunpack.c.l.b16 %v142
      %v223 = vunpack.c.l.b16 %v143
      %v224 = vunpack.c.l.b16 %v144
      %v225 = vunpack.c.l.b16 %v145
      %v226 = vunpack.c.l.b16 %v146
      %v227 = vunpack.c.l.b16 %v147
      %v228 = vunpack.c.l.b16 %v148
      %v229 = vunpack.c.l.b16 %v149
      %v230 = vunpack.c.l.b16 %v150
      %v231 = vunpack.c.l.b16 %v151
      %v232 = vunpack.c.l.b16 %v152
      %v233 = vunpack.c.l.b16 %v153
      %v234 = vunpack.c.l.b16 %v154
      %v235 = vunpack.c.l.b16 %v155
      %v236 = vunpack.c.l.b16 %v156
      %v237 = vunpack.c.l.b16 %v157
      %v238 = vpack.c.b16 %v223, %v222
      %v239 = vpack.c.b16 %v225, %v224
      %v240 = vpack.c.b16 %v227, %v226
      %v241 = vpack.c.b16 %v229, %v228
      %v242 = vpack.c.b16 %v231, %v230
      %v243 = vpack.c.b16 %v233, %v232
      %v244 = vpack.c.b16 %v235, %v234
      %v245 = vpack.c.b16 %v237, %v236
      %254 = vmatprep.subr.bf16.mxu0 0
      %255 = vmatpush1.bf16.msra.mxu0 %v245
      %256 = vmatprep.subr.bf16.mxu0 0
      %257 = vmatpush1.bf16.msra.mxu0 %v244
      %258 = vmatprep.subr.bf16.mxu0 0
      %259 = vmatpush1.bf16.msra.mxu0 %v243
      %260 = vmatprep.subr.bf16.mxu0 0
      %261 = vmatpush1.bf16.msra.mxu0 %v242
      %262 = vmatprep.subr.bf16.mxu0 0
      %263 = vmatpush1.bf16.msra.mxu0 %v241
      %264 = vmatprep.subr.bf16.mxu0 0
      %265 = vmatpush1.bf16.msra.mxu0 %v240
      %266 = vmatprep.subr.bf16.mxu0 0
      %267 = vmatpush1.bf16.msra.mxu0 %v239
      %268 = vmatprep.subr.bf16.mxu0 0
      %269 = vmatpush1.bf16.msra.mxu0 %v238
      %270 = vmatprep.subr.bf16.mxu0 0
      %271 = vmatpush2.bf16.msra.mxu0 0
      %272 = vmatprep.subr.bf16.mxu0 0
      %273 = vmatpush2.bf16.msra.mxu0 0
      %274 = vmatprep.subr.bf16.mxu0 0
      %275 = vmatpush2.bf16.msra.mxu0 0
      %276 = vmatprep.subr.bf16.mxu0 0
      %277 = vmatpush2.bf16.msra.mxu0 0
      %278 = vmatprep.subr.bf16.mxu0 0
      %279 = vmatpush2.bf16.msra.mxu0 0
      %280 = vmatprep.subr.bf16.mxu0 0
      %281 = vmatpush2.bf16.msra.mxu0 0
      %282 = vmatprep.subr.bf16.mxu0 0
      %283 = vmatpush2.bf16.msra.mxu0 0
      %284 = vmatprep.subr.bf16.mxu0 0
      %285 = vmatpush2.bf16.msra.mxu0 0
      %286 = vmatprep.mubr.bf16.mxu0 0
      %287 = vmatmul.mubr.bf16.gmra.mxu0 %v190
      %v288 = vpop.f32.mrf.mxu0
      %v289 = vadd.f32 0.0, %v288
      %v290 = vpop.f32.mrf.mxu0
      %v291 = vpop.f32.mrf.mxu0
      %v292 = vadd.f32 0.0, %v291
      %v293 = vpop.f32.mrf.mxu0
      %294 = vmatprep.mubr.bf16.mxu0 0
      %295 = vmatmul.mubr.bf16.gmra.mxu0 %v191
      %v296 = vpop.f32.mrf.mxu0
      %v297 = vadd.f32 0.0, %v296
      %v298 = vpop.f32.mrf.mxu0
      %v299 = vpop.f32.mrf.mxu0
      %v300 = vadd.f32 0.0, %v299
      %v301 = vpop.f32.mrf.mxu0
      %302 = vmatprep.mubr.bf16.mxu0 0
      %303 = vmatmul.mubr.bf16.gmra.mxu0 %v192
      %v304 = vpop.f32.mrf.mxu0
      %v305 = vadd.f32 0.0, %v304
      %v306 = vpop.f32.mrf.mxu0
      %v307 = vpop.f32.mrf.mxu0
      %v308 = vadd.f32 0.0, %v307
      %v309 = vpop.f32.mrf.mxu0
      %310 = vmatprep.mubr.bf16.mxu0 0
      %311 = vmatmul.mubr.bf16.gmra.mxu0 %v193
      %v312 = vpop.f32.mrf.mxu0
      %v313 = vadd.f32 0.0, %v312
      %v314 = vpop.f32.mrf.mxu0
      %v315 = vpop.f32.mrf.mxu0
      %v316 = vadd.f32 0.0, %v315
      %v317 = vpop.f32.mrf.mxu0
      %318 = vmatprep.mubr.bf16.mxu0 0
      %319 = vmatmul.mubr.bf16.gmra.mxu0 %v194
      %v320 = vpop.f32.mrf.mxu0
      %v321 = vadd.f32 0.0, %v320
      %v322 = vpop.f32.mrf.mxu0
      %v323 = vpop.f32.mrf.mxu0
      %v324 = vadd.f32 0.0, %v323
      %v325 = vpop.f32.mrf.mxu0
      %326 = vmatprep.mubr.bf16.mxu0 0
      %327 = vmatmul.mubr.bf16.gmra.mxu0 %v195
      %v328 = vpop.f32.mrf.mxu0
      %v329 = vadd.f32 0.0, %v328
      %v330 = vpop.f32.mrf.mxu0
      %v331 = vpop.f32.mrf.mxu0
      %v332 = vadd.f32 0.0, %v331
      %v333 = vpop.f32.mrf.mxu0
      %334 = vmatprep.mubr.bf16.mxu0 0
      %335 = vmatmul.mubr.bf16.gmra.mxu0 %v196
      %v336 = vpop.f32.mrf.mxu0
      %v337 = vadd.f32 0.0, %v336
      %v338 = vpop.f32.mrf.mxu0
      %v339 = vpop.f32.mrf.mxu0
      %v340 = vadd.f32 0.0, %v339
      %v341 = vpop.f32.mrf.mxu0
      %342 = vmatprep.mubr.bf16.mxu0 0
      %343 = vmatmul.mubr.bf16.gmra.mxu0 %v197
      %v344 = vpop.f32.mrf.mxu0
      %v345 = vadd.f32 0.0, %v344
      %v346 = vpop.f32.mrf.mxu0
      %v347 = vpop.f32.mrf.mxu0
      %v348 = vadd.f32 0.0, %v347
      %v349 = vpop.f32.mrf.mxu0
      %350 = vdwg.mxu0
      %v351 = vadd.f32 %v110, %v289
      %v352 = vadd.f32 %v111, %v292
      %v353 = vadd.f32 %v112, %v297
      %v354 = vadd.f32 %v113, %v300
      %v355 = vadd.f32 %v114, %v305
      %v356 = vadd.f32 %v115, %v308
      %v357 = vadd.f32 %v116, %v313
      %v358 = vadd.f32 %v117, %v316
      %v359 = vadd.f32 %v118, %v321
      %v360 = vadd.f32 %v119, %v324
      %v361 = vadd.f32 %v120, %v329
      %v362 = vadd.f32 %v121, %v332
      %v363 = vadd.f32 %v122, %v337
      %v364 = vadd.f32 %v123, %v340
      %v365 = vadd.f32 %v124, %v345
      %v366 = vadd.f32 %v125, %v348
      %367 = vst [vmem:[#allocation12] sm:$0xff] %v351
      %368 = vst [vmem:[#allocation12 + $0x8] sm:$0xff] %v352
      %369 = vst [vmem:[#allocation12 + $0x10] sm:$0xff] %v353
      %370 = vst [vmem:[#allocation12 + $0x18] sm:$0xff] %v354
      %371 = vst [vmem:[#allocation12 + $0x20] sm:$0xff] %v355
      %372 = vst [vmem:[#allocation12 + $0x28] sm:$0xff] %v356
      %373 = vst [vmem:[#allocation12 + $0x30] sm:$0xff] %v357
      %374 = vst [vmem:[#allocation12 + $0x38] sm:$0xff] %v358
      %375 = vst [vmem:[#allocation12 + $0x40] sm:$0xff] %v359
      %376 = vst [vmem:[#allocation12 + $0x48] sm:$0xff] %v360
      %377 = vst [vmem:[#allocation12 + $0x50] sm:$0xff] %v361
      %378 = vst [vmem:[#allocation12 + $0x58] sm:$0xff] %v362
      %379 = vst [vmem:[#allocation12 + $0x60] sm:$0xff] %v363
      %380 = vst [vmem:[#allocation12 + $0x68] sm:$0xff] %v364
      %381 = vst [vmem:[#allocation12 + $0x70] sm:$0xff] %v365
      %382 = vst [vmem:[#allocation12 + $0x78] sm:$0xff] %v366
    $region25: #{tpu_custom_call.1} parent=1 // pred_fallthru
      _
    %s383 = sld [smem:[#allocation4 + %s82]]
    %p384 = scmp.eq.s32.totalorder %s85, %s383
    %p385 = pnand %p84, %p384
    %p386 = pneg %p385
    // Predicated region
    $region26: #{tpu_custom_call.1} parent=1 // pred_check
      _
    $region27: #{tpu_custom_call.1} parent=1 // pred_check_branch
      %388 = sbr.rel (%p385) target = $region29
    $region28: #{tpu_custom_call.1} parent=1 // pred_region
      %v389 = vld [vmem:[#allocation12] sm:$0xff]
      %v390 = vld [vmem:[#allocation12 + $0x8] sm:$0xff]
      %v391 = vld [vmem:[#allocation12 + $0x10] sm:$0xff]
      %v392 = vld [vmem:[#allocation12 + $0x18] sm:$0xff]
      %v393 = vld [vmem:[#allocation12 + $0x20] sm:$0xff]
      %v394 = vld [vmem:[#allocation12 + $0x28] sm:$0xff]
      %v395 = vld [vmem:[#allocation12 + $0x30] sm:$0xff]
      %v396 = vld [vmem:[#allocation12 + $0x38] sm:$0xff]
      %v397 = vld [vmem:[#allocation12 + $0x40] sm:$0xff]
      %v398 = vld [vmem:[#allocation12 + $0x48] sm:$0xff]
      %v399 = vld [vmem:[#allocation12 + $0x50] sm:$0xff]
      %v400 = vld [vmem:[#allocation12 + $0x58] sm:$0xff]
      %v401 = vld [vmem:[#allocation12 + $0x60] sm:$0xff]
      %v402 = vld [vmem:[#allocation12 + $0x68] sm:$0xff]
      %v403 = vld [vmem:[#allocation12 + $0x70] sm:$0xff]
      %v404 = vld [vmem:[#allocation12 + $0x78] sm:$0xff]
      %405 = vxpose.xlu0.b32.start [1/16] %v389, 128
      %406 = vxpose.xlu0.b32.cont [2/16] %v390, 128
      %407 = vxpose.xlu0.b32.cont [3/16] %v391, 128
      %408 = vxpose.xlu0.b32.cont [4/16] %v392, 128
      %409 = vxpose.xlu0.b32.cont [5/16] %v393, 128
      %410 = vxpose.xlu0.b32.cont [6/16] %v394, 128
      %411 = vxpose.xlu0.b32.cont [7/16] %v395, 128
      %412 = vxpose.xlu0.b32.cont [8/16] %v396, 128
      %413 = vxpose.xlu0.b32.cont [9/16] %v397, 128
      %414 = vxpose.xlu0.b32.cont [10/16] %v398, 128
      %415 = vxpose.xlu0.b32.cont [11/16] %v399, 128
      %416 = vxpose.xlu0.b32.cont [12/16] %v400, 128
      %417 = vxpose.xlu0.b32.cont [13/16] %v401, 128
      %418 = vxpose.xlu0.b32.cont [14/16] %v402, 128
      %419 = vxpose.xlu0.b32.cont [15/16] %v403, 128
      %420 = vxpose.xlu0.b32.end [16/16] %v404, 128
      %v421 = vpop.trf.xlu0
      %v422 = vpop.trf.xlu0
      %v423 = vpop.trf.xlu0
      %v424 = vpop.trf.xlu0
      %v425 = vpop.trf.xlu0
      %v426 = vpop.trf.xlu0
      %v427 = vpop.trf.xlu0
      %v428 = vpop.trf.xlu0
      %v429 = vpop.trf.xlu0
      %v430 = vpop.trf.xlu0
      %v431 = vpop.trf.xlu0
      %v432 = vpop.trf.xlu0
      %v433 = vpop.trf.xlu0
      %v434 = vpop.trf.xlu0
      %v435 = vpop.trf.xlu0
      %v436 = vpop.trf.xlu0
      %437 = vst [vmem:[#allocation13] sm:$0xff] %v421
      %438 = vst [vmem:[#allocation13 + $0x8] sm:$0xff] %v422
      %439 = vst [vmem:[#allocation13 + $0x10] sm:$0xff] %v423
      %440 = vst [vmem:[#allocation13 + $0x18] sm:$0xff] %v424
      %441 = vst [vmem:[#allocation13 + $0x20] sm:$0xff] %v425
      %442 = vst [vmem:[#allocation13 + $0x28] sm:$0xff] %v426
      %443 = vst [vmem:[#allocation13 + $0x30] sm:$0xff] %v427
      %444 = vst [vmem:[#allocation13 + $0x38] sm:$0xff] %v428
      %445 = vst [vmem:[#allocation13 + $0x40] sm:$0xff] %v429
      %446 = vst [vmem:[#allocation13 + $0x48] sm:$0xff] %v430
      %447 = vst [vmem:[#allocation13 + $0x50] sm:$0xff] %v431
      %448 = vst [vmem:[#allocation13 + $0x58] sm:$0xff] %v432
      %449 = vst [vmem:[#allocation13 + $0x60] sm:$0xff] %v433
      %450 = vst [vmem:[#allocation13 + $0x68] sm:$0xff] %v434
      %451 = vst [vmem:[#allocation13 + $0x70] sm:$0xff] %v435
      %452 = vst [vmem:[#allocation13 + $0x78] sm:$0xff] %v436
    $region29: #{tpu_custom_call.1} parent=1 // pred_fallthru
      _
    // Predicated region
    $region30: #{tpu_custom_call.1} parent=1 // pred_check
      _
    $region31: #{tpu_custom_call.1} parent=1 // pred_check_branch
      %454 = sbr.rel (0) target = $region33
    $region32: #{tpu_custom_call.1} parent=1 // pred_region
      %s455 = sadd.s32 0, 0
      %s456 = sld [smem:[#allocation3 + %s455]]
      %s457 = sld [smem:[#allocation4 + %s455]]
      %s458 = smul.u32 16, %s456
      %s460 = ssub.s32 2048, 2048
      %461 = vsyncadd [#allocation9], %s460
      %s462 = sadd.s32 %s457, %s458
      %s463 = smul.addr %s462, 128
      %s464 = scalar_lea.hbm %s6, %s463
      %s465 = sshll.u32 [#allocation12], 4
      %s466 = int_to_ptr.vmem [resolvable:$true] %s465
      %471 = dma.vmem_to_hbm [thread:$0]  %s466, 2048, %s464, [#allocation9], 128, 128, 8
    $region33: #{tpu_custom_call.1} parent=1 // pred_fallthru
      _
    // Predicated region
    $region34: #{tpu_custom_call.1} parent=1 // pred_check
      _
    $region35: #{tpu_custom_call.1} parent=1 // pred_check_branch
      %473 = sbr.rel (0) target = $region37
    $region36: #{tpu_custom_call.1} parent=1 // pred_region
      %s474 = sadd.s32 0, 0
      %s475 = sld [smem:[#allocation4 + %s474]]
      %s476 = sld [smem:[#allocation3 + %s474]]
      %s477 = smul.u32 16, %s475
      %s479 = ssub.s32 2048, 2048
      %480 = vsyncadd [#allocation14], %s479
      %s481 = sadd.s32 %s476, %s477
      %s482 = smul.addr %s481, 128
      %s483 = scalar_lea.hbm %s7, %s482
      %s484 = sshll.u32 [#allocation13], 4
      %s485 = int_to_ptr.vmem [resolvable:$true] %s484
      %490 = dma.vmem_to_hbm [thread:$0]  %s485, 2048, %s483, [#allocation14], 128, 128, 8
    $region37: #{tpu_custom_call.1} parent=1 // pred_fallthru
      _
    // Predicated region
    $region38: #{tpu_custom_call.1} parent=1 // pred_check
      _
    $region39: #{tpu_custom_call.1} parent=1 // pred_check_branch
      %492 = sbr.rel (0) target = $region41
    $region40: #{tpu_custom_call.1} parent=1 // pred_region
      %493 = dma.done [#allocation9], 2048
    $region41: #{tpu_custom_call.1} parent=1 // pred_fallthru
      _
    // Predicated region
    $region42: #{tpu_custom_call.1} parent=1 // pred_check
      _
    $region43: #{tpu_custom_call.1} parent=1 // pred_check_branch
      %495 = sbr.rel (0) target = $region45
    $region44: #{tpu_custom_call.1} parent=1 // pred_region
      %496 = dma.done [#allocation14], 2048
    $region45: #{tpu_custom_call.1} parent=1 // pred_fallthru
      _
    %497 = vsyncpa [#allocation8], 1
    %498 = vsyncpa [#allocation11], 1
    %499 = vsyncpa [#allocation9], 1
    %500 = vsyncpa [#allocation14], 1

</llo_original>
